<compile_context>
chip_gen: v7x
topology: tpu7x:2x2x1
jax: 0.10.0
libtpu: 0.0.40
codegen_flags: <defaults>
</compile_context>

<pallas_src>
import functools

import numpy as np
import jax
import jax.numpy as jnp
from jax.experimental import pallas as pl
from jax.experimental.pallas import tpu as pltpu

_W_ROW_ALIGN = 16  # bf16 packs 16 rows per vreg -> keep each weight section aligned


def _rup(n, m=_W_ROW_ALIGN):
    return ((n + m - 1) // m) * m


def _weight_row_offsets(num_hidden_layers, d_in_total, h1):
    """Static row offsets of each weight section inside the packed weight array."""
    offs, o = [], 0
    offs.append(o)
    o += _rup(d_in_total)
    for _ in range(num_hidden_layers - 1):
        offs.append(o)
        o += _rup(h1)
    off3 = o
    total = o + _rup(h1)
    return offs, off3, total


def make_discrete2_kernel(num_hidden_layers, dim, d_out, h1, d_in_total, n, eps=1e-5):
    """Kernel for a Discrete2 net with `num_hidden_layers` (Linear+BN+ReLU) blocks.

    Ref layout (per grid step / evaluation):
      x_ref:   (N, D_total) f32   -- full input incl. the label column `dim`
      w_ref:   (R, P)       bf16  -- packed [W1(+zero row at dim), W2, ..., W3]
      p_ref:   (2L+1, P)    f32   -- packed [gamma_0, beta_0, ..., b3]
      out_ref: (N+1, D_out) f32   -- rows 0..N-1 = softmax probs, row N = loss
    """
    offs, off3, _ = _weight_row_offsets(num_hidden_layers, d_in_total, h1)
    inv_n = 1.0 / n  # static constant -> multiply, never divide

    def kernel(x_ref, w_ref, p_ref, out_ref):
        x = x_ref[...]                                   # (N, D_total) f32

        # Label column (class ids stored as floats) -- only used by the NLL one-hot.
        y = x[:, dim:dim + 1]                            # (N, 1) f32

        # First matmul consumes the FULL x; W1 has a zero row at `dim`, so the
        # label column contributes exactly nothing (no gather needed).
        h = x.astype(jnp.bfloat16)
        for li in range(num_hidden_layers):
            rows = d_in_total if li == 0 else h1
            w_li = w_ref[offs[li]:offs[li] + rows, :h1]  # bf16 (rows, H1)
            z = jnp.dot(h, w_li, preferred_element_type=jnp.float32)  # (N, H1) f32

            # BatchNorm1d (training mode): single-pass, independent reductions.
            # Hidden-layer Linear biases omitted; BN mean-subtraction cancels them.
            s1 = jnp.sum(z, axis=0, keepdims=True)
            s2 = jnp.sum(z * z, axis=0, keepdims=True)
            mu = s1 * inv_n
            var = s2 * inv_n - mu * mu                   # biased batch variance

            gamma = p_ref[2 * li:2 * li + 1, :h1]
            beta = p_ref[2 * li + 1:2 * li + 2, :h1]
            scale = gamma * jax.lax.rsqrt(var + eps)     # fused BN affine
            shift = beta - mu * scale
            h = jnp.maximum(z * scale + shift, 0.0).astype(jnp.bfloat16)  # ReLU

        w3 = w_ref[off3:off3 + h1, :d_out]
        b3 = p_ref[2 * num_hidden_layers:2 * num_hidden_layers + 1, :d_out]
        logits = jnp.dot(h, w3, preferred_element_type=jnp.float32) + b3   # (N, D_out)

        # softmax over classes (== Categorical(...).probs)
        m = jnp.max(logits, axis=1, keepdims=True)
        e = jnp.exp(logits - m)
        s = jnp.sum(e, axis=1, keepdims=True)
        probs = e * pl.reciprocal(s, approx=True)

        # cross-entropy loss (mean reduction) against float-encoded labels
        logp = (logits - m) - jnp.log(s)                 # log-softmax
        cls = jax.lax.broadcasted_iota(jnp.int32, (n, d_out), 1).astype(jnp.float32)
        onehot = (cls == y).astype(jnp.float32)
        nll = -jnp.sum(onehot * logp, axis=1, keepdims=True)   # (N, 1)
        loss = jnp.sum(nll, axis=0, keepdims=True) * inv_n     # (1, 1)

        out_ref[:n, :] = probs
        out_ref[n:n + 1, :] = jnp.broadcast_to(loss, (1, d_out))

    return kernel


def init_params(key, d_in_feat, h1, num_extra_layers, d_out):
    """PyTorch-like init: Linear weights/biases ~ U(-1/sqrt(fan_in), 1/sqrt(fan_in)),
    BatchNorm1d gamma=1, beta=0.  (Hidden biases are initialized for fidelity even
    though training-mode BN cancels them; the kernel simply does not consume them.)"""
    params = []
    dims = [(d_in_feat, h1)] + [(h1, h1)] * num_extra_layers
    for (fi, fo) in dims:
        key, kw, kb = jax.random.split(key, 3)
        bound = 1.0 / np.sqrt(fi)
        w = jax.random.uniform(kw, (fi, fo), jnp.float32, -bound, bound)
        b = jax.random.uniform(kb, (1, fo), jnp.float32, -bound, bound)
        gamma = jnp.ones((1, fo), jnp.float32)
        beta = jnp.zeros((1, fo), jnp.float32)
        params += [w, b, gamma, beta]
    key, kw, kb = jax.random.split(key, 3)
    bound = 1.0 / np.sqrt(h1)
    w3 = jax.random.uniform(kw, (h1, d_out), jnp.float32, -bound, bound)
    b3 = jax.random.uniform(kb, (1, d_out), jnp.float32, -bound, bound)
    params += [w3, b3]
    return params


def pack_params(params, dim, num_extra_layers, d_out):
    """One-time prep (call when params change, NOT per forward).

    Returns:
      wpack: bf16 (R, P) -- W1 (with a zero row inserted at `dim`), hidden Ws, W3,
                            each section zero-padded to 16-row alignment.
      ppack: f32 (2L+1, P) -- [gamma_0, beta_0, ..., gamma_{L-1}, beta_{L-1}, b3].
      static: (num_hidden_layers, h1, d_in_total) python ints for the kernel factory.
    Hidden Linear biases are dropped (training-mode BN cancels them)."""
    num_hidden_layers = 1 + num_extra_layers
    weights, gammas, betas = [], [], []
    idx = 0
    for _ in range(num_hidden_layers):
        w, _b, g, be = params[idx:idx + 4]   # hidden bias _b dropped (BN cancels it)
        idx += 4
        weights.append(w)
        gammas.append(g)
        betas.append(be)
    w3, b3 = params[idx], params[idx + 1]

    h1 = weights[0].shape[1]
    # Insert a zero row at `dim` into W1 so the label column of x is ignored.
    w1 = weights[0]
    zero_row = jnp.zeros((1, h1), w1.dtype)
    weights[0] = jnp.concatenate([w1[:dim], zero_row, w1[dim:]], axis=0)
    d_in_total = weights[0].shape[0]

    p_width = max(h1, d_out)

    def pad_to(v, rows, cols):
        return jnp.pad(v, ((0, rows - v.shape[0]), (0, cols - v.shape[1])))

    # One packed bf16 weight array -> one DMA instead of 3-4 tiny ones.
    w_rows = [pad_to(wmat, _rup(wmat.shape[0]), p_width) for wmat in weights + [w3]]
    wpack = jnp.concatenate(w_rows, axis=0).astype(jnp.bfloat16)

    # One packed f32 array for all tiny per-layer params.
    p_rows = []
    for g, be in zip(gammas, betas):
        p_rows += [pad_to(g, 1, p_width), pad_to(be, 1, p_width)]
    p_rows.append(pad_to(b3, 1, p_width))
    ppack = jnp.concatenate(p_rows, axis=0).astype(jnp.float32)

    return wpack, ppack, (num_hidden_layers, h1, d_in_total)


@functools.partial(jax.jit, static_argnames=("dim", "num_hidden_layers", "h1", "d_out"))
def discrete2_forward_packed(xs, wpack, ppack, *, dim, num_hidden_layers, h1, d_out):
    """Amortized entry: xs is (E, N, D_total) stacked independent evaluations.

    grid=(E,) with constant index_maps for the packed weights/params so they stay
    VMEM-resident across grid steps; the E axis is 'parallel' (both v7x TCs).
    Returns (probs (E, N, d_out), loss (E,))."""
    e_dim, n, d_in_total = xs.shape
    kernel = make_discrete2_kernel(num_hidden_layers, dim, d_out, h1, d_in_total, n)

    out = pl.pallas_call(
        kernel,
        grid=(e_dim,),
        out_shape=jax.ShapeDtypeStruct((e_dim, n + 1, d_out), jnp.float32),
        in_specs=[
            pl.BlockSpec((None, n, d_in_total), lambda e: (e, 0, 0)),
            pl.BlockSpec(wpack.shape, lambda e: (0, 0)),   # weights stay resident
            pl.BlockSpec(ppack.shape, lambda e: (0, 0)),   # params stay resident
        ],
        out_specs=pl.BlockSpec((None, n + 1, d_out), lambda e: (e, 0, 0)),
        compiler_params=pltpu.CompilerParams(dimension_semantics=("parallel",)),
    )(xs, wpack, ppack)

    probs = out[:, :n, :]
    loss = out[:, n, 0]
    return probs, loss


@functools.partial(jax.jit, static_argnames=("dim", "num_hidden_layers", "h1", "d_out"))
def discrete2_forward(x, wpack, ppack, *, dim, num_hidden_layers, h1, d_out):
    """Single-evaluation forward: returns (probs, loss) ==
    (Categorical(softmax(logits)).probs, CrossEntropyLoss(logits, x[:, dim]))."""
    probs, loss = discrete2_forward_packed(
        x[None], wpack, ppack, dim=dim, num_hidden_layers=num_hidden_layers,
        h1=h1, d_out=d_out)
    return probs[0], loss[0]


def _reference_forward_f32(x, params, dim, num_extra_layers, d_out, eps=1e-5):
    """PyTorch-faithful pure-JAX f32 reference (hidden biases included, two-pass BN)."""
    n, _ = x.shape
    y = x[:, dim].astype(jnp.int32)
    h = jnp.concatenate([x[:, :dim], x[:, dim + 1:]], axis=1)
    idx = 0
    for _ in range(1 + num_extra_layers):
        w, b, g, be = params[idx], params[idx + 1], params[idx + 2], params[idx + 3]
        idx += 4
        h = h @ w + b
        mu = jnp.mean(h, axis=0, keepdims=True)
        var = jnp.mean((h - mu) ** 2, axis=0, keepdims=True)
        h = jnp.maximum((h - mu) / jnp.sqrt(var + eps) * g + be, 0.0)
    logits = h @ params[idx] + params[idx + 1]
    probs = jax.nn.softmax(logits, axis=1)
    logp = jax.nn.log_softmax(logits, axis=1)
    loss = -jnp.mean(logp[jnp.arange(n), y])
    return probs, loss


def _reference_forward_matched(x, wpack, ppack, *, dim, num_hidden_layers, h1, d_out,
                               eps=1e-5):
    """Pure-JAX reference mirroring the kernel math exactly (packed bf16 weights,
    dropped hidden biases, sum/sumsq BN, fused affine)."""
    n, d_in_total = x.shape
    inv_n = 1.0 / n
    offs, off3, _ = _weight_row_offsets(num_hidden_layers, d_in_total, h1)
    y = x[:, dim:dim + 1]
    h = x.astype(jnp.bfloat16)
    for li in range(num_hidden_layers):
        rows = d_in_total if li == 0 else h1
        w_li = wpack[offs[li]:offs[li] + rows, :h1]
        z = jnp.dot(h, w_li, preferred_element_type=jnp.float32)
        mu = jnp.sum(z, axis=0, keepdims=True) * inv_n
        var = jnp.sum(z * z, axis=0, keepdims=True) * inv_n - mu * mu
        gamma = ppack[2 * li:2 * li + 1, :h1]
        beta = ppack[2 * li + 1:2 * li + 2, :h1]
        scale = gamma * jax.lax.rsqrt(var + eps)
        shift = beta - mu * scale
        h = jnp.maximum(z * scale + shift, 0.0).astype(jnp.bfloat16)
    w3 = wpack[off3:off3 + h1, :d_out]
    b3 = ppack[2 * num_hidden_layers:2 * num_hidden_layers + 1, :d_out]
    logits = jnp.dot(h, w3, preferred_element_type=jnp.float32) + b3
    probs = jax.nn.softmax(logits, axis=1)
    logp = jax.nn.log_softmax(logits, axis=1)
    yi = y.astype(jnp.int32)[:, 0]
    loss = -jnp.mean(logp[jnp.arange(n), yi])
    return probs, loss


if __name__ == "__main__":
    # Small shapes consistent with the module:
    #   raw input x: (N, D_in_total); column `dim` holds integer class labels (as floats).
    N = 16            # batch
    D_in_total = 8    # columns of the raw input (features + 1 label column)
    H1 = 32           # hidden width
    LAYER = 2         # => 1 extra (Linear, BatchNorm) block beyond the first
    D_OUT = 4         # number of classes
    DIM = 3           # label column index
    num_extra = LAYER - 1

    key = jax.random.PRNGKey(0)
    key, k_feat, k_lab, k_param = jax.random.split(key, 4)

    feats = jax.random.normal(k_feat, (N, D_in_total), jnp.float32)
    labels = jax.random.randint(k_lab, (N,), 0, D_OUT).astype(jnp.float32)
    x = feats.at[:, DIM].set(labels)

    params = init_params(k_param, D_in_total - 1, H1, num_extra, D_OUT)

    # One-time packing, hoisted out of the forward's hot path.
    wpack, ppack, (L, h1, d_in_total) = pack_params(params, DIM, num_extra, D_OUT)

    # --- single-evaluation forward ---
    probs, loss = discrete2_forward(x, wpack, ppack, dim=DIM, num_hidden_layers=L,
                                    h1=h1, d_out=D_OUT)
    jax.block_until_ready((probs, loss))
    assert probs.shape == (N, D_OUT)

    # Tight check against a precision-matched JAX reference (same bf16 weights/math).
    m_probs, m_loss = _reference_forward_matched(
        x, wpack, ppack, dim=DIM, num_hidden_layers=L, h1=h1, d_out=D_OUT)
    assert np.allclose(np.asarray(probs), np.asarray(m_probs), rtol=1e-2, atol=5e-3)
    assert np.allclose(float(loss), float(m_loss), rtol=1e-2, atol=1e-3)

    # Looser check against the PyTorch-faithful f32 reference (bf16-matmul tolerance).
    ref_probs, ref_loss = _reference_forward_f32(x, params, DIM, num_extra, D_OUT)
    assert np.allclose(np.asarray(probs), np.asarray(ref_probs), rtol=5e-2, atol=2e-2)
    assert np.allclose(float(loss), float(ref_loss), rtol=5e-2, atol=2e-2)

    # --- amortized multi-evaluation forward (weights VMEM-resident across the grid) ---
    E = 4
    key, k_mf, k_ml = jax.random.split(key, 3)
    xs = jax.random.normal(k_mf, (E, N, D_in_total), jnp.float32)
    multi_labels = jax.random.randint(k_ml, (E, N), 0, D_OUT).astype(jnp.float32)
    xs = xs.at[:, :, DIM].set(multi_labels)

    probs_e, loss_e = discrete2_forward_packed(
        xs, wpack, ppack, dim=DIM, num_hidden_layers=L, h1=h1, d_out=D_OUT)
    jax.block_until_ready((probs_e, loss_e))
    assert probs_e.shape == (E, N, D_OUT) and loss_e.shape == (E,)
    for ei in range(E):
        mp, ml = _reference_forward_matched(
            xs[ei], wpack, ppack, dim=DIM, num_hidden_layers=L, h1=h1, d_out=D_OUT)
        assert np.allclose(np.asarray(probs_e[ei]), np.asarray(mp), rtol=1e-2, atol=5e-3)
        assert np.allclose(float(loss_e[ei]), float(ml), rtol=1e-2, atol=1e-3)

    print("KERNEL_OK")
</pallas_src>

<mosaic_0001>
module attributes {stable_mosaic.version = 11 : i64} {
  func.func @kernel(%arg0: i32, %arg1: memref<1x16x8xf32, #tpu.memory_space<vmem>>, %arg2: memref<80x32xbf16, #tpu.memory_space<vmem>>, %arg3: memref<5x32xf32, #tpu.memory_space<vmem>>, %arg4: memref<1x17x4xf32, #tpu.memory_space<vmem>>) attributes {dimension_semantics = [#tpu.dimension_semantics<parallel>], iteration_bounds = array<i64: 1>, scalar_prefetch = 0 : i64, scratch_operands = 0 : i64, tpu.core_type = #tpu.core_type<tc>, window_params = [{transform_indices = @transform_0, window_bounds = array<i64: 1, 16, 8>}, {pipeline_mode = #tpu.pipeline_mode<synchronous>, transform_indices = @transform_1, window_bounds = array<i64: 80, 32>}, {pipeline_mode = #tpu.pipeline_mode<synchronous>, transform_indices = @transform_2, window_bounds = array<i64: 5, 32>}, {transform_indices = @transform_3, window_bounds = array<i64: 1, 17, 4>}]} {
    %c0 = arith.constant 0 : index
    %c0_0 = arith.constant 0 : index
    %c0_1 = arith.constant 0 : index
    %0 = vector.load %arg1[%c0, %c0_0, %c0_1] : memref<1x16x8xf32, #tpu.memory_space<vmem>>, vector<1x16x8xf32>
    %1 = vector.shape_cast %0 : vector<1x16x8xf32> to vector<16x8xf32>
    %2 = vector.extract_strided_slice %1 {offsets = [0, 3], sizes = [16, 1], strides = [1, 1]} : vector<16x8xf32> to vector<16x1xf32>
    %3 = arith.truncf %1 : vector<16x8xf32> to vector<16x8xbf16>
    %c0_2 = arith.constant 0 : index
    %c0_3 = arith.constant 0 : index
    %4 = vector.load %arg2[%c0_2, %c0_3] : memref<80x32xbf16, #tpu.memory_space<vmem>>, vector<8x32xbf16>
    %cst = arith.constant dense<0.000000e+00> : vector<16x32xf32>
    %5 = tpu.matmul %3, %4, %cst {dimension_numbers = #tpu.dot_dimension_numbers<[1], [0], [0], [1], [0, 0, 1, 1], [], []>} : vector<16x8xbf16>, vector<8x32xbf16>, vector<16x32xf32> -> vector<16x32xf32>
    %cst_4 = arith.constant dense<0.000000e+00> : vector<32xf32>
    %6 = vector.multi_reduction <add>, %5, %cst_4 [0] : vector<16x32xf32> to vector<32xf32>
    %7 = vector.shape_cast %6 : vector<32xf32> to vector<1x32xf32>
    %8 = arith.mulf %5, %5 : vector<16x32xf32>
    %cst_5 = arith.constant dense<0.000000e+00> : vector<32xf32>
    %9 = vector.multi_reduction <add>, %8, %cst_5 [0] : vector<16x32xf32> to vector<32xf32>
    %10 = vector.shape_cast %9 : vector<32xf32> to vector<1x32xf32>
    %cst_6 = arith.constant 6.250000e-02 : f32
    %11 = vector.broadcast %cst_6 : f32 to vector<1x32xf32>
    %12 = arith.mulf %7, %11 : vector<1x32xf32>
    %cst_7 = arith.constant 6.250000e-02 : f32
    %13 = vector.broadcast %cst_7 : f32 to vector<1x32xf32>
    %14 = arith.mulf %10, %13 : vector<1x32xf32>
    %15 = arith.mulf %12, %12 : vector<1x32xf32>
    %16 = arith.subf %14, %15 : vector<1x32xf32>
    %c0_8 = arith.constant 0 : index
    %c0_9 = arith.constant 0 : index
    %17 = vector.load %arg3[%c0_8, %c0_9] : memref<5x32xf32, #tpu.memory_space<vmem>>, vector<1x32xf32>
    %c1 = arith.constant 1 : index
    %c0_10 = arith.constant 0 : index
    %18 = vector.load %arg3[%c1, %c0_10] : memref<5x32xf32, #tpu.memory_space<vmem>>, vector<1x32xf32>
    %cst_11 = arith.constant 9.99999974E-6 : f32
    %19 = vector.broadcast %cst_11 : f32 to vector<1x32xf32>
    %20 = arith.addf %16, %19 : vector<1x32xf32>
    %21 = math.rsqrt %20 : vector<1x32xf32>
    %22 = arith.mulf %17, %21 : vector<1x32xf32>
    %23 = arith.mulf %12, %22 : vector<1x32xf32>
    %24 = arith.subf %18, %23 : vector<1x32xf32>
    %25 = vector.broadcast %22 : vector<1x32xf32> to vector<16x32xf32>
    %26 = arith.mulf %5, %25 : vector<16x32xf32>
    %27 = vector.broadcast %24 : vector<1x32xf32> to vector<16x32xf32>
    %28 = arith.addf %26, %27 : vector<16x32xf32>
    %cst_12 = arith.constant 0.000000e+00 : f32
    %29 = vector.broadcast %cst_12 : f32 to vector<16x32xf32>
    %30 = arith.maximumf %28, %29 : vector<16x32xf32>
    %31 = arith.truncf %30 : vector<16x32xf32> to vector<16x32xbf16>
    %c16 = arith.constant 16 : index
    %c0_13 = arith.constant 0 : index
    %32 = vector.load %arg2[%c16, %c0_13] : memref<80x32xbf16, #tpu.memory_space<vmem>>, vector<32x32xbf16>
    %cst_14 = arith.constant dense<0.000000e+00> : vector<16x32xf32>
    %33 = tpu.matmul %31, %32, %cst_14 {dimension_numbers = #tpu.dot_dimension_numbers<[1], [0], [0], [1], [0, 0, 1, 1], [], []>} : vector<16x32xbf16>, vector<32x32xbf16>, vector<16x32xf32> -> vector<16x32xf32>
    %cst_15 = arith.constant dense<0.000000e+00> : vector<32xf32>
    %34 = vector.multi_reduction <add>, %33, %cst_15 [0] : vector<16x32xf32> to vector<32xf32>
    %35 = vector.shape_cast %34 : vector<32xf32> to vector<1x32xf32>
    %36 = arith.mulf %33, %33 : vector<16x32xf32>
    %cst_16 = arith.constant dense<0.000000e+00> : vector<32xf32>
    %37 = vector.multi_reduction <add>, %36, %cst_16 [0] : vector<16x32xf32> to vector<32xf32>
    %38 = vector.shape_cast %37 : vector<32xf32> to vector<1x32xf32>
    %cst_17 = arith.constant 6.250000e-02 : f32
    %39 = vector.broadcast %cst_17 : f32 to vector<1x32xf32>
    %40 = arith.mulf %35, %39 : vector<1x32xf32>
    %cst_18 = arith.constant 6.250000e-02 : f32
    %41 = vector.broadcast %cst_18 : f32 to vector<1x32xf32>
    %42 = arith.mulf %38, %41 : vector<1x32xf32>
    %43 = arith.mulf %40, %40 : vector<1x32xf32>
    %44 = arith.subf %42, %43 : vector<1x32xf32>
    %c2 = arith.constant 2 : index
    %c0_19 = arith.constant 0 : index
    %45 = vector.load %arg3[%c2, %c0_19] : memref<5x32xf32, #tpu.memory_space<vmem>>, vector<1x32xf32>
    %c3 = arith.constant 3 : index
    %c0_20 = arith.constant 0 : index
    %46 = vector.load %arg3[%c3, %c0_20] : memref<5x32xf32, #tpu.memory_space<vmem>>, vector<1x32xf32>
    %cst_21 = arith.constant 9.99999974E-6 : f32
    %47 = vector.broadcast %cst_21 : f32 to vector<1x32xf32>
    %48 = arith.addf %44, %47 : vector<1x32xf32>
    %49 = math.rsqrt %48 : vector<1x32xf32>
    %50 = arith.mulf %45, %49 : vector<1x32xf32>
    %51 = arith.mulf %40, %50 : vector<1x32xf32>
    %52 = arith.subf %46, %51 : vector<1x32xf32>
    %53 = vector.broadcast %50 : vector<1x32xf32> to vector<16x32xf32>
    %54 = arith.mulf %33, %53 : vector<16x32xf32>
    %55 = vector.broadcast %52 : vector<1x32xf32> to vector<16x32xf32>
    %56 = arith.addf %54, %55 : vector<16x32xf32>
    %cst_22 = arith.constant 0.000000e+00 : f32
    %57 = vector.broadcast %cst_22 : f32 to vector<16x32xf32>
    %58 = arith.maximumf %56, %57 : vector<16x32xf32>
    %59 = arith.truncf %58 : vector<16x32xf32> to vector<16x32xbf16>
    %c48 = arith.constant 48 : index
    %c0_23 = arith.constant 0 : index
    %60 = vector.load %arg2[%c48, %c0_23] : memref<80x32xbf16, #tpu.memory_space<vmem>>, vector<32x4xbf16>
    %c4 = arith.constant 4 : index
    %c0_24 = arith.constant 0 : index
    %61 = vector.load %arg3[%c4, %c0_24] : memref<5x32xf32, #tpu.memory_space<vmem>>, vector<1x4xf32>
    %cst_25 = arith.constant dense<0.000000e+00> : vector<16x4xf32>
    %62 = tpu.matmul %59, %60, %cst_25 {dimension_numbers = #tpu.dot_dimension_numbers<[1], [0], [0], [1], [0, 0, 1, 1], [], []>} : vector<16x32xbf16>, vector<32x4xbf16>, vector<16x4xf32> -> vector<16x4xf32>
    %63 = vector.broadcast %61 : vector<1x4xf32> to vector<16x4xf32>
    %64 = arith.addf %62, %63 : vector<16x4xf32>
    %cst_26 = arith.constant dense<0xFF800000> : vector<16xf32>
    %65 = vector.multi_reduction <maximumf>, %64, %cst_26 [1] : vector<16x4xf32> to vector<16xf32>
    %66 = vector.shape_cast %65 : vector<16xf32> to vector<16x1xf32>
    %67 = vector.broadcast %66 : vector<16x1xf32> to vector<16x4xf32>
    %68 = arith.subf %64, %67 : vector<16x4xf32>
    %69 = math.exp %68 : vector<16x4xf32>
    %cst_27 = arith.constant dense<0.000000e+00> : vector<16xf32>
    %70 = vector.multi_reduction <add>, %69, %cst_27 [1] : vector<16x4xf32> to vector<16xf32>
    %71 = vector.shape_cast %70 : vector<16xf32> to vector<16x1xf32>
    %72 = tpu.reciprocal %71 {approx = true} : vector<16x1xf32> -> vector<16x1xf32>
    %73 = vector.broadcast %72 : vector<16x1xf32> to vector<16x4xf32>
    %74 = arith.mulf %69, %73 : vector<16x4xf32>
    %75 = vector.broadcast %66 : vector<16x1xf32> to vector<16x4xf32>
    %76 = arith.subf %64, %75 : vector<16x4xf32>
    %77 = math.log %71 : vector<16x1xf32>
    %78 = vector.broadcast %77 : vector<16x1xf32> to vector<16x4xf32>
    %79 = arith.subf %76, %78 : vector<16x4xf32>
    %80 = tpu.iota {dimensions = array<i32: 1>} : vector<16x4xi32>
    %81 = arith.sitofp %80 : vector<16x4xi32> to vector<16x4xf32>
    %82 = vector.broadcast %2 : vector<16x1xf32> to vector<16x4xf32>
    %83 = arith.cmpf oeq, %81, %82 : vector<16x4xf32>
    %84 = arith.extui %83 : vector<16x4xi1> to vector<16x4xi32>
    %85 = arith.sitofp %84 : vector<16x4xi32> to vector<16x4xf32>
    %86 = arith.mulf %85, %79 : vector<16x4xf32>
    %cst_28 = arith.constant dense<0.000000e+00> : vector<16xf32>
    %87 = vector.multi_reduction <add>, %86, %cst_28 [1] : vector<16x4xf32> to vector<16xf32>
    %88 = vector.shape_cast %87 : vector<16xf32> to vector<16x1xf32>
    %cst_29 = arith.constant 0.000000e+00 : f32
    %89 = vector.broadcast %cst_29 : f32 to vector<16x1xf32>
    %90 = arith.subf %89, %88 : vector<16x1xf32>
    %cst_30 = arith.constant dense<0.000000e+00> : vector<1xf32>
    %91 = vector.multi_reduction <add>, %90, %cst_30 [0] : vector<16x1xf32> to vector<1xf32>
    %92 = vector.shape_cast %91 : vector<1xf32> to vector<1x1xf32>
    %cst_31 = arith.constant 6.250000e-02 : f32
    %93 = vector.broadcast %cst_31 : f32 to vector<1x1xf32>
    %94 = arith.mulf %92, %93 : vector<1x1xf32>
    %c0_32 = arith.constant 0 : index
    %c0_33 = arith.constant 0 : index
    %c0_34 = arith.constant 0 : index
    %95 = vector.load %arg4[%c0_32, %c0_33, %c0_34] : memref<1x17x4xf32, #tpu.memory_space<vmem>>, vector<1x16x4xf32>
    %96 = vector.shape_cast %95 : vector<1x16x4xf32> to vector<16x4xf32>
    %97 = vector.shape_cast %74 : vector<16x4xf32> to vector<1x16x4xf32>
    tpu.vector_store %arg4[%c0_32, %c0_33, %c0_34], %97 {strides = array<i32>} : memref<1x17x4xf32, #tpu.memory_space<vmem>>, vector<1x16x4xf32>,
    %98 = vector.shape_cast %94 : vector<1x1xf32> to vector<1x1xf32>
    %99 = vector.broadcast %98 : vector<1x1xf32> to vector<1x4xf32>
    %c0_35 = arith.constant 0 : index
    %c16_36 = arith.constant 16 : index
    %c0_37 = arith.constant 0 : index
    %100 = vector.load %arg4[%c0_35, %c16_36, %c0_37] : memref<1x17x4xf32, #tpu.memory_space<vmem>>, vector<1x1x4xf32>
    %101 = vector.shape_cast %100 : vector<1x1x4xf32> to vector<1x4xf32>
    %102 = vector.shape_cast %99 : vector<1x4xf32> to vector<1x1x4xf32>
    tpu.vector_store %arg4[%c0_35, %c16_36, %c0_37], %102 {strides = array<i32>} : memref<1x17x4xf32, #tpu.memory_space<vmem>>, vector<1x1x4xf32>,
    return
  }
  func.func @transform_0(%arg0: i32) -> (i32, i32, i32) {
    %c0_i32 = arith.constant 0 : i32
    %c0_i32_0 = arith.constant 0 : i32
    %c0_i32_1 = arith.constant 0 : i32
    return %arg0, %c0_i32, %c0_i32_0 : i32, i32, i32
  }
  func.func @transform_1(%arg0: i32) -> (i32, i32) {
    %c0_i32 = arith.constant 0 : i32
    %c0_i32_0 = arith.constant 0 : i32
    %c0_i32_1 = arith.constant 0 : i32
    return %c0_i32, %c0_i32_0 : i32, i32
  }
  func.func @transform_2(%arg0: i32) -> (i32, i32) {
    %c0_i32 = arith.constant 0 : i32
    %c0_i32_0 = arith.constant 0 : i32
    %c0_i32_1 = arith.constant 0 : i32
    return %c0_i32, %c0_i32_0 : i32, i32
  }
  func.func @transform_3(%arg0: i32) -> (i32, i32, i32) {
    %c0_i32 = arith.constant 0 : i32
    %c0_i32_0 = arith.constant 0 : i32
    %c0_i32_1 = arith.constant 0 : i32
    return %arg0, %c0_i32, %c0_i32_0 : i32, i32, i32
  }
}

</mosaic_0001>

<llo_original>
// kernel: discrete2_forward_packed.1
$region0: #{discrete2_forward_packed.1}
  #allocation0 [shape = 'u32[]', space=smem, size = 0x4, offset = 0x4, fixed_abs, tag = 'smem constant byte address 0x4 - core index']
  #allocation1 [shape = 'u32[144,128]{1,0:T(1,128)}', space=vmem, size = 0x12000, scoped, tag = 'internal scratch']
  %s0 = inlined_call_operand.vmem [shape: f32[1,16,8], index: 0, kind: input, shape index: {}]
  %s1 = inlined_call_operand.vmem [shape: bf16[80,32], index: 1, kind: input, shape index: {}]
  %s2 = inlined_call_operand.vmem [shape: f32[5,32], index: 2, kind: input, shape index: {}]
  %s3 = inlined_call_operand.vmem [shape: f32[1,17,4], index: 3, kind: output, shape index: {}]
  %s4 = sld [smem:[#allocation0]]
  $region22: #{discrete2_forward_packed.1} parent=0
    _
  %s6 = ssub.s32 1, %s4
  %s7 = scalar_select 0, %s6, %s4
  // Predicated region
  $region2: #{discrete2_forward_packed.1} parent=0 // pred_check
    _
  $region3: #{discrete2_forward_packed.1} parent=0 // pred_check_branch
    %9 = sbr.rel (0) target = $region5
  $region4: #{discrete2_forward_packed.1} parent=0 // pred_region
    _
  $region5: #{discrete2_forward_packed.1} parent=0 // pred_fallthru
    _
  // Predicated region
  $region6: #{discrete2_forward_packed.1} parent=0 // pred_check
    _
  $region7: #{discrete2_forward_packed.1} parent=0 // pred_check_branch
    %11 = sbr.rel (0) target = $region9
  $region8: #{discrete2_forward_packed.1} parent=0 // pred_region
    _
  $region9: #{discrete2_forward_packed.1} parent=0 // pred_fallthru
    _
  // Predicated region
  $region10: #{discrete2_forward_packed.1} parent=0 // pred_check
    _
  $region11: #{discrete2_forward_packed.1} parent=0 // pred_check_branch
    %13 = sbr.rel (0) target = $region13
  $region12: #{discrete2_forward_packed.1} parent=0 // pred_region
    _
  $region13: #{discrete2_forward_packed.1} parent=0 // pred_fallthru
    _
  %v15 = vld [vmem:[%s0] sm:$0xff]
  %v16 = vld [vmem:[%s0 + $0x8] sm:$0xff]
  %v17 = vpack.c.bf16 %v16, %v15
  %v18 = vld [vmem:[%s1] sm:$0xf]
  %vm19 = vcmask 64512
  %v21 = vsel %vm19, %v17, 0
  %vm23 = vcmask 1043456
  %v25 = vsel %vm23, %v18, 0
  %27 = vmatprep.subr.bf16.mxu0 0
  %28 = vmatpush1.bf16.msra.mxu0 %v25
  %29 = vmatprep.subr.bf16.mxu0 0
  %30 = vmatpush1.bf16.msra.mxu0 0
  %31 = vmatprep.subr.bf16.mxu0 0
  %32 = vmatpush1.bf16.msra.mxu0 0
  %33 = vmatprep.subr.bf16.mxu0 0
  %34 = vmatpush1.bf16.msra.mxu0 0
  %35 = vmatprep.subr.bf16.mxu0 0
  %36 = vmatpush1.bf16.msra.mxu0 0
  %37 = vmatprep.subr.bf16.mxu0 0
  %38 = vmatpush1.bf16.msra.mxu0 0
  %39 = vmatprep.subr.bf16.mxu0 0
  %40 = vmatpush1.bf16.msra.mxu0 0
  %41 = vmatprep.subr.bf16.mxu0 0
  %42 = vmatpush1.bf16.msra.mxu0 0
  %43 = vmatprep.subr.bf16.mxu0 0
  %44 = vmatpush1.bf16.msra.mxu0 0
  %45 = vmatprep.subr.bf16.mxu0 0
  %46 = vmatpush1.bf16.msra.mxu0 0
  %47 = vmatprep.subr.bf16.mxu0 0
  %48 = vmatpush1.bf16.msra.mxu0 0
  %49 = vmatprep.subr.bf16.mxu0 0
  %50 = vmatpush1.bf16.msra.mxu0 0
  %51 = vmatprep.subr.bf16.mxu0 0
  %52 = vmatpush1.bf16.msra.mxu0 0
  %53 = vmatprep.subr.bf16.mxu0 0
  %54 = vmatpush1.bf16.msra.mxu0 0
  %55 = vmatprep.subr.bf16.mxu0 0
  %56 = vmatpush1.bf16.msra.mxu0 0
  %57 = vmatprep.subr.bf16.mxu0 0
  %58 = vmatpush1.bf16.msra.mxu0 0
  %59 = vmatprep.mubr.bf16.mxu0 0
  %60 = vmatmul.mubr.bf16.gmra.mrb[0].mxu0 %v21
  %v61 = vpop.f32.mrb[0].mxu0
  %v62 = vadd.f32 0.0, %v61
  %v63 = vpop.f32.mrb[0].mxu0
  %v64 = vpop.f32.mrb[0].mxu0
  %v65 = vadd.f32 0.0, %v64
  %v66 = vpop.f32.mrb[0].mxu0
  %67 = vdwg.mxu0
  %vm68 = vcmask 261120
  %v69 = vsel %vm68, %v62, 0.0
  %v70 = vsel %vm68, %v65, 0.0
  %v71 = vadd.f32 %v69, %v70
  %v72 = vrot.slane %v71, 4
  %v73 = vadd.f32 %v71, %v72
  %v74 = vrot.slane %v73, 2
  %v75 = vadd.f32 %v73, %v74
  %v76 = vrot.slane %v75, 1
  %v77 = vadd.f32 %v75, %v76
  %v78 = vmul.f32 %v62, %v62
  %v79 = vmul.f32 %v65, %v65
  %v80 = vsel %vm68, %v78, 0.0
  %v81 = vsel %vm68, %v79, 0.0
  %v82 = vadd.f32 %v80, %v81
  %v83 = vrot.slane %v82, 4
  %v84 = vadd.f32 %v82, %v83
  %v85 = vrot.slane %v84, 2
  %v86 = vadd.f32 %v84, %v85
  %v87 = vrot.slane %v86, 1
  %v88 = vadd.f32 %v86, %v87
  %v89 = vmul.f32 %v77, 0.0625
  %v90 = vmul.f32 %v88, 0.0625
  %v91 = vmul.f32 %v89, %v89
  %v92 = vsub.f32 %v90, %v91
  %v93 = vld [vmem:[%s2] sm:$0x1]
  %v94 = vld [vmem:[%s2 + $0x1] sm:$0x1]
  %v95 = vadd.f32 %v92, 1e-05
  %v96 = vrsqrt.pop %v95
  %v97 = vmul.f32 %v93, %v96
  %v98 = vmul.f32 %v89, %v97
  %v99 = vsub.f32 %v94, %v98
  %v100 = vlaneseq
  %v101 = vshrl.u32 %v100, 7
  %v102 = vsub.s32 0, %v101
  %v103 = vrot.slane %v97, %v102
  %v104 = vmul.f32 %v62, %v103
  %v105 = vmul.f32 %v65, %v103
  %v106 = vlaneseq
  %v107 = vshrl.u32 %v106, 7
  %v108 = vsub.s32 0, %v107
  %v109 = vrot.slane %v99, %v108
  %v110 = vadd.f32 %v104, %v109
  %v111 = vadd.f32 %v105, %v109
  %v112 = vmax.f32 %v110, 0.0
  %v113 = vmax.f32 %v111, 0.0
  %v114 = vpack.c.bf16 %v113, %v112
  %v115 = vld [vmem:[%s1 + $0x8] sm:$0xf]
  %v116 = vld [vmem:[%s1 + $0xc] sm:$0xf]
  %v117 = vld [vmem:[%s1 + $0x10] sm:$0xf]
  %v118 = vld [vmem:[%s1 + $0x14] sm:$0xf]
  %v123 = vunpack.c.l.b16 %v115
  %v124 = vunpack.c.l.b16 %v116
  %v125 = vunpack.c.l.b16 %v117
  %v126 = vunpack.c.l.b16 %v118
  %v127 = vpack.c.b16 %v124, %v123
  %v128 = vpack.c.b16 %v126, %v125
  %v132 = vsel %vm68, %v114, 0
  %134 = vmatprep.subr.bf16.mxu0 0
  %135 = vmatpush1.bf16.msra.mxu0 %v127
  %136 = vmatprep.subr.bf16.mxu0 0
  %137 = vmatpush1.bf16.msra.mxu0 %v128
  %138 = vmatprep.subr.bf16.mxu0 0
  %139 = vmatpush1.bf16.msra.mxu0 0
  %140 = vmatprep.subr.bf16.mxu0 0
  %141 = vmatpush1.bf16.msra.mxu0 0
  %142 = vmatprep.subr.bf16.mxu0 0
  %143 = vmatpush1.bf16.msra.mxu0 0
  %144 = vmatprep.subr.bf16.mxu0 0
  %145 = vmatpush1.bf16.msra.mxu0 0
  %146 = vmatprep.subr.bf16.mxu0 0
  %147 = vmatpush1.bf16.msra.mxu0 0
  %148 = vmatprep.subr.bf16.mxu0 0
  %149 = vmatpush1.bf16.msra.mxu0 0
  %150 = vmatprep.subr.bf16.mxu0 0
  %151 = vmatpush1.bf16.msra.mxu0 0
  %152 = vmatprep.subr.bf16.mxu0 0
  %153 = vmatpush1.bf16.msra.mxu0 0
  %154 = vmatprep.subr.bf16.mxu0 0
  %155 = vmatpush1.bf16.msra.mxu0 0
  %156 = vmatprep.subr.bf16.mxu0 0
  %157 = vmatpush1.bf16.msra.mxu0 0
  %158 = vmatprep.subr.bf16.mxu0 0
  %159 = vmatpush1.bf16.msra.mxu0 0
  %160 = vmatprep.subr.bf16.mxu0 0
  %161 = vmatpush1.bf16.msra.mxu0 0
  %162 = vmatprep.subr.bf16.mxu0 0
  %163 = vmatpush1.bf16.msra.mxu0 0
  %164 = vmatprep.subr.bf16.mxu0 0
  %165 = vmatpush1.bf16.msra.mxu0 0
  %166 = vmatprep.mubr.bf16.mxu0 0
  %167 = vmatmul.mubr.bf16.gmra.mrb[0].mxu0 %v132
  %v168 = vpop.f32.mrb[0].mxu0
  %v169 = vadd.f32 0.0, %v168
  %v170 = vpop.f32.mrb[0].mxu0
  %v171 = vpop.f32.mrb[0].mxu0
  %v172 = vadd.f32 0.0, %v171
  %v173 = vpop.f32.mrb[0].mxu0
  %174 = vdwg.mxu0
  %v175 = vsel %vm68, %v169, 0.0
  %v176 = vsel %vm68, %v172, 0.0
  %v177 = vadd.f32 %v175, %v176
  %v178 = vrot.slane %v177, 4
  %v179 = vadd.f32 %v177, %v178
  %v180 = vrot.slane %v179, 2
  %v181 = vadd.f32 %v179, %v180
  %v182 = vrot.slane %v181, 1
  %v183 = vadd.f32 %v181, %v182
  %v184 = vmul.f32 %v169, %v169
  %v185 = vmul.f32 %v172, %v172
  %v186 = vsel %vm68, %v184, 0.0
  %v187 = vsel %vm68, %v185, 0.0
  %v188 = vadd.f32 %v186, %v187
  %v189 = vrot.slane %v188, 4
  %v190 = vadd.f32 %v188, %v189
  %v191 = vrot.slane %v190, 2
  %v192 = vadd.f32 %v190, %v191
  %v193 = vrot.slane %v192, 1
  %v194 = vadd.f32 %v192, %v193
  %v195 = vmul.f32 %v183, 0.0625
  %v196 = vmul.f32 %v194, 0.0625
  %v197 = vmul.f32 %v195, %v195
  %v198 = vsub.f32 %v196, %v197
  %v199 = vld [vmem:[%s2 + $0x2] sm:$0x1]
  %v200 = vld [vmem:[%s2 + $0x3] sm:$0x1]
  %v201 = vadd.f32 %v198, 1e-05
  %v202 = vrsqrt.pop %v201
  %v203 = vmul.f32 %v199, %v202
  %v204 = vmul.f32 %v195, %v203
  %v205 = vsub.f32 %v200, %v204
  %v206 = vlaneseq
  %v207 = vshrl.u32 %v206, 7
  %v208 = vsub.s32 0, %v207
  %v209 = vrot.slane %v203, %v208
  %v210 = vmul.f32 %v169, %v209
  %v211 = vmul.f32 %v172, %v209
  %v212 = vlaneseq
  %v213 = vshrl.u32 %v212, 7
  %v214 = vsub.s32 0, %v213
  %v215 = vrot.slane %v205, %v214
  %v216 = vadd.f32 %v210, %v215
  %v217 = vadd.f32 %v211, %v215
  %v218 = vmax.f32 %v216, 0.0
  %v219 = vmax.f32 %v217, 0.0
  %v220 = vpack.c.bf16 %v219, %v218
  %v221 = vld [vmem:[%s1 + $0x18] sm:$0xf]
  %v222 = vld [vmem:[%s1 + $0x1c] sm:$0xf]
  %v223 = vld [vmem:[%s1 + $0x20] sm:$0xf]
  %v224 = vld [vmem:[%s1 + $0x24] sm:$0xf]
  %v225 = vld [vmem:[%s2 + $0x4] sm:$0x1]
  %v226 = vlaneseq
  %v227 = vshrl.u32 %v226, 7
  %v228 = vsub.s32 0, %v227
  %v229 = vrot.slane %v225, %v228
  %v234 = vunpack.c.l.b16 %v221
  %v235 = vunpack.c.l.b16 %v222
  %v236 = vunpack.c.l.b16 %v223
  %v237 = vunpack.c.l.b16 %v224
  %v238 = vpack.c.b16 %v235, %v234
  %v239 = vpack.c.b16 %v237, %v236
  %v243 = vsel %vm68, %v220, 0
  %245 = vmatprep.subr.bf16.mxu0 0
  %246 = vmatpush1.bf16.msra.mxu0 %v238
  %247 = vmatprep.subr.bf16.mxu0 0
  %248 = vmatpush1.bf16.msra.mxu0 %v239
  %249 = vmatprep.subr.bf16.mxu0 0
  %250 = vmatpush1.bf16.msra.mxu0 0
  %251 = vmatprep.subr.bf16.mxu0 0
  %252 = vmatpush1.bf16.msra.mxu0 0
  %253 = vmatprep.subr.bf16.mxu0 0
  %254 = vmatpush1.bf16.msra.mxu0 0
  %255 = vmatprep.subr.bf16.mxu0 0
  %256 = vmatpush1.bf16.msra.mxu0 0
  %257 = vmatprep.subr.bf16.mxu0 0
  %258 = vmatpush1.bf16.msra.mxu0 0
  %259 = vmatprep.subr.bf16.mxu0 0
  %260 = vmatpush1.bf16.msra.mxu0 0
  %261 = vmatprep.subr.bf16.mxu0 0
  %262 = vmatpush1.bf16.msra.mxu0 0
  %263 = vmatprep.subr.bf16.mxu0 0
  %264 = vmatpush1.bf16.msra.mxu0 0
  %265 = vmatprep.subr.bf16.mxu0 0
  %266 = vmatpush1.bf16.msra.mxu0 0
  %267 = vmatprep.subr.bf16.mxu0 0
  %268 = vmatpush1.bf16.msra.mxu0 0
  %269 = vmatprep.subr.bf16.mxu0 0
  %270 = vmatpush1.bf16.msra.mxu0 0
  %271 = vmatprep.subr.bf16.mxu0 0
  %272 = vmatpush1.bf16.msra.mxu0 0
  %273 = vmatprep.subr.bf16.mxu0 0
  %274 = vmatpush1.bf16.msra.mxu0 0
  %275 = vmatprep.subr.bf16.mxu0 0
  %276 = vmatpush1.bf16.msra.mxu0 0
  %277 = vmatprep.mubr.bf16.mxu0 0
  %278 = vmatmul.mubr.bf16.gmra.mrb[0].mxu0 %v243
  %v279 = vpop.f32.mrb[0].mxu0
  %v280 = vadd.f32 %v229, %v279
  %v281 = vpop.f32.mrb[0].mxu0
  %v282 = vpop.f32.mrb[0].mxu0
  %v283 = vadd.f32 %v229, %v282
  %v284 = vpop.f32.mrb[0].mxu0
  %285 = vdwg.mxu0
  %vm286 = vcmask 31744
  %v287 = vsel %vm286, %v280, -inf
  %288 = vmax.xlane.f32.xlu0 %v287
  %v289 = vpop.xlane.xlu0 %288
  %v290 = vsel %vm286, %v283, -inf
  %291 = vmax.xlane.f32.xlu0 %v290
  %v292 = vpop.xlane.xlu0 %291
  %v293 = vsub.f32 %v280, %v289
  %v294 = vsub.f32 %v283, %v292
  %v295 = vmul.f32 %v293, 1.442695
  %v296 = vpow.pop %v295
  %v297 = vmul.f32 %v294, 1.442695
  %v298 = vpow.pop %v297
  %v299 = vsel %vm286, %v296, 0.0
  %300 = vadd.xlane.f32.xlu0 %v299
  %v301 = vpop.xlane.xlu0 %300
  %v302 = vsel %vm286, %v298, 0.0
  %303 = vadd.xlane.f32.xlu0 %v302
  %v304 = vpop.xlane.xlu0 %303
  %v305 = vrcp.pop %v301
  %v306 = vrcp.pop %v304
  %v307 = vmul.f32 %v296, %v305
  %v308 = vmul.f32 %v298, %v306
  %v309 = vlog2.pop %v301
  %v310 = vmul.f32 %v309, 0.6931472
  %v311 = vlog2.pop %v304
  %v312 = vmul.f32 %v311, 0.6931472
  %v313 = vsub.f32 %v293, %v310
  %v314 = vsub.f32 %v294, %v312
  %v315 = vlaneseq
  %v316 = vand.u32 %v315, 127
  %v317 = vcvt.s32.f32 %v316
  %319 = vset.pattern.permute.xlu0 3
  %320 = vperm.xlu0 %319, %v15
  %v321 = vpop.permute.xlu0 %320
  %324 = vset.pattern.permute.xlu0 3
  %325 = vperm.xlu0 %324, %v16
  %v326 = vpop.permute.xlu0 %325
  %vm328 = vcmp.eq.f32.partialorder %v317, %v321
  %vm329 = vcmp.eq.f32.partialorder %v317, %v326
  %v330 = vsel %vm328, 1, 0
  %v331 = vsel %vm329, 1, 0
  %v332 = vcvt.s32.f32 %v330
  %v333 = vcvt.s32.f32 %v331
  %v334 = vmul.f32 %v332, %v313
  %v335 = vmul.f32 %v333, %v314
  %v336 = vsel %vm286, %v334, 0.0
  %337 = vadd.xlane.f32.xlu0 %v336
  %v338 = vpop.xlane.xlu0 %337
  %v339 = vsel %vm286, %v335, 0.0
  %340 = vadd.xlane.f32.xlu0 %v339
  %v341 = vpop.xlane.xlu0 %340
  %v342 = vsub.f32 0.0, %v338
  %v343 = vsub.f32 0.0, %v341
  %v344 = vadd.f32 %v342, %v343
  %v345 = vrot.slane %v344, 4
  %v346 = vadd.f32 %v344, %v345
  %v347 = vrot.slane %v346, 2
  %v348 = vadd.f32 %v346, %v347
  %v349 = vrot.slane %v348, 1
  %v350 = vadd.f32 %v348, %v349
  %v351 = vmul.f32 %v350, 0.0625
  %352 = vst.msk [vmem:[%s3] sm:$0xff] %vm286, %v307
  %353 = vst.msk [vmem:[%s3 + $0x8] sm:$0xff] %vm286, %v308
  %vm354 = vcmask 24576
  %355 = vst.msk [vmem:[%s3 + $0x10] sm:$0x1] %vm354, %v351
  // Predicated region
  $region14: #{discrete2_forward_packed.1} parent=0 // pred_check
    _
  $region15: #{discrete2_forward_packed.1} parent=0 // pred_check_branch
    %357 = sbr.rel (0) target = $region17
  $region16: #{discrete2_forward_packed.1} parent=0 // pred_region
    _
  $region17: #{discrete2_forward_packed.1} parent=0 // pred_fallthru
    _
  // Predicated region
  $region18: #{discrete2_forward_packed.1} parent=0 // pred_check
    _
  $region19: #{discrete2_forward_packed.1} parent=0 // pred_check_branch
    %359 = sbr.rel (0) target = $region21
  $region20: #{discrete2_forward_packed.1} parent=0 // pred_region
    _
  $region21: #{discrete2_forward_packed.1} parent=0 // pred_fallthru
    _

</llo_original>
